<compile_context>
chip_gen: v6e
topology: v6e:2x2x1
jax: 0.10.0
libtpu: 0.0.40
codegen_flags: <defaults>
</compile_context>

<pallas_src>
import jax
import jax.numpy as jnp
from jax.experimental import pallas as pl
from jax.experimental.pallas import tpu as pltpu


def _round_up(x, m):
    return ((x + m - 1) // m) * m


def _make_kernel(B, TT, I, Hp, Op):
    def kernel(x_ref, wih_ref, whh_ref, b_ref, wfc_ref, bfc_ref, y_ref, h_ref):
        c = pl.program_id(0)

        @pl.when(c == 0)
        def _():
            h_ref[...] = jnp.zeros_like(h_ref)        # h_0 = 0 (PyTorch default)

        # Hoisted input projection for the whole chunk: one large MXU matmul instead of
        # TT tiny per-step matmuls; fused bias folded in here, out of the serial chain.
        x_c = x_ref[...].reshape(B * TT, I)            # (B*TT, I), layout-trivial for TT%8==0
        g = jnp.dot(x_c, wih_ref[...], preferred_element_type=jnp.float32) + b_ref[...]
        g = g.reshape(B, TT, Hp)

        whh = whh_ref[...]
        h = h_ref[...]
        # Serial recurrence, fully unrolled: only h @ W_hh + tanh sits on the critical path.
        for t in range(TT):
            h = jnp.tanh(jnp.dot(h, whh, preferred_element_type=jnp.float32) + g[:, t, :])
        h_ref[...] = h

        @pl.when(c == pl.num_programs(0) - 1)
        def _():
            y = jnp.dot(h, wfc_ref[...], preferred_element_type=jnp.float32) + bfc_ref[...]
            y_ref[...] = y.astype(y_ref.dtype)         # fc(last hidden) == Y[:, -1, :]

    return kernel


def rnn_forward(x, w_ih, w_hh, b_ih, b_hh, w_fc, b_fc, *, time_chunk=None):
    """x: (B, T, I) f32.  Weights pre-transposed vs PyTorch: w_ih (I,H), w_hh (H,H),
    w_fc (H,O).  Returns fc(rnn(x))[:, -1, :] of shape (B, O)."""
    B, T, I = x.shape
    H = w_hh.shape[0]
    O = w_fc.shape[1]
    assert T >= 1, "nn.RNN requires at least one timestep"

    # Time-chunk size: multiples of 8 keep the in-kernel reshape layout-trivial.
    if time_chunk is None:
        time_chunk = T
        for tt in (32, 16, 8):
            if T % tt == 0:
                time_chunk = tt
                break
    TT = time_chunk
    assert T % TT == 0, "time_chunk must divide T"
    num_chunks = T // TT

    # Pad hidden / output widths to full 128-lane tiles.  Padded lanes see zero weights
    # and zero bias, so they stay exactly 0 through the whole recurrence.
    Hp = _round_up(H, 128)
    Op = _round_up(O, 128)
    wih_p = jnp.zeros((I, Hp), jnp.float32).at[:, :H].set(w_ih)
    whh_p = jnp.zeros((Hp, Hp), jnp.float32).at[:H, :H].set(w_hh)
    b_p   = jnp.zeros((1, Hp), jnp.float32).at[0, :H].set(b_ih + b_hh)   # fused bias
    wfc_p = jnp.zeros((Hp, Op), jnp.float32).at[:H, :O].set(w_fc)
    bfc_p = jnp.zeros((1, Op), jnp.float32).at[0, :O].set(b_fc)

    kernel = _make_kernel(B, TT, I, Hp, Op)

    grid_spec = pltpu.PrefetchScalarGridSpec(
        num_scalar_prefetch=0,
        grid=(num_chunks,),
        in_specs=[
            pl.BlockSpec((B, TT, I), lambda c: (0, c, 0)),   # x chunk, native layout, pipelined
            pl.BlockSpec((I, Hp),  lambda c: (0, 0)),        # W_ih^T  (resident)
            pl.BlockSpec((Hp, Hp), lambda c: (0, 0)),        # W_hh^T  (resident)
            pl.BlockSpec((1, Hp),  lambda c: (0, 0)),        # fused bias
            pl.BlockSpec((Hp, Op), lambda c: (0, 0)),        # W_fc^T
            pl.BlockSpec((1, Op),  lambda c: (0, 0)),        # b_fc
        ],
        out_specs=pl.BlockSpec((B, Op), lambda c: (0, 0)),   # resident; written at last chunk
        scratch_shapes=[pltpu.VMEM((B, Hp), jnp.float32)],   # hidden-state carry
    )

    y_pad = pl.pallas_call(
        kernel,
        out_shape=jax.ShapeDtypeStruct((B, Op), jnp.float32),
        grid_spec=grid_spec,
        compiler_params=pltpu.CompilerParams(
            dimension_semantics=("arbitrary",),              # time recurrence is serial
        ),
    )(x, wih_p, whh_p, b_p, wfc_p, bfc_p)

    return y_pad[:, :O]


def rnn_reference(x, w_ih, w_hh, b_ih, b_hh, w_fc, b_fc):
    """Pure-JAX reference mirroring nn.RNN(batch_first=True) + nn.Linear, last step."""
    B, T, I = x.shape
    H = w_hh.shape[0]
    b = b_ih + b_hh
    h = jnp.zeros((B, H), jnp.float32)
    for t in range(T):
        h = jnp.tanh(x[:, t, :] @ w_ih + b + h @ w_hh)
    return h @ w_fc + b_fc


if __name__ == "__main__":
    # Small shapes consistent with the module's forward (B, T, input_size) -> (B, output_size).
    B, T, I, H, O = 4, 16, 24, 32, 4

    key = jax.random.PRNGKey(0)
    ks = jax.random.split(key, 8)
    bound = 1.0 / jnp.sqrt(H)  # PyTorch nn.RNN / nn.Linear uniform init bound

    x    = jax.random.normal(ks[0], (B, T, I), jnp.float32)
    # Weights stored pre-transposed relative to PyTorch's (H, I)/(H, H)/(O, H) convention.
    w_ih = jax.random.uniform(ks[1], (I, H), jnp.float32, -bound, bound)
    w_hh = jax.random.uniform(ks[2], (H, H), jnp.float32, -bound, bound)
    b_ih = jax.random.uniform(ks[3], (H,),   jnp.float32, -bound, bound)
    b_hh = jax.random.uniform(ks[4], (H,),   jnp.float32, -bound, bound)
    w_fc = jax.random.uniform(ks[5], (H, O), jnp.float32, -bound, bound)
    b_fc = jax.random.uniform(ks[6], (O,),   jnp.float32, -bound, bound)

    # time_chunk=8 -> 2 grid steps, exercising the cross-chunk hidden-state carry.
    y = rnn_forward(x, w_ih, w_hh, b_ih, b_hh, w_fc, b_fc, time_chunk=8)
    y = jax.block_until_ready(y)

    y_ref = rnn_reference(x, w_ih, w_hh, b_ih, b_hh, w_fc, b_fc)
    assert y.shape == (B, O)
    assert jnp.allclose(y, y_ref, atol=1e-4, rtol=1e-4), "mismatch vs pure-JAX reference"

    print("KERNEL_OK")
</pallas_src>

<mosaic_0001>
module attributes {stable_mosaic.version = 11 : i64} {
  func.func @kernel(%arg0: i32, %arg1: memref<4x8x24xf32, #tpu.memory_space<vmem>>, %arg2: memref<24x128xf32, #tpu.memory_space<vmem>>, %arg3: memref<128x128xf32, #tpu.memory_space<vmem>>, %arg4: memref<1x128xf32, #tpu.memory_space<vmem>>, %arg5: memref<128x128xf32, #tpu.memory_space<vmem>>, %arg6: memref<1x128xf32, #tpu.memory_space<vmem>>, %arg7: memref<4x128xf32, #tpu.memory_space<vmem>>, %arg8: memref<4x128xf32, #tpu.memory_space<vmem>>) attributes {dimension_semantics = [#tpu.dimension_semantics<arbitrary>], iteration_bounds = array<i64: 2>, scalar_prefetch = 0 : i64, scratch_operands = 1 : i64, tpu.core_type = #tpu.core_type<tc>, window_params = [{transform_indices = @transform_0, window_bounds = array<i64: 4, 8, 24>}, {pipeline_mode = #tpu.pipeline_mode<synchronous>, transform_indices = @transform_1, window_bounds = array<i64: 24, 128>}, {pipeline_mode = #tpu.pipeline_mode<synchronous>, transform_indices = @transform_2, window_bounds = array<i64: 128, 128>}, {pipeline_mode = #tpu.pipeline_mode<synchronous>, transform_indices = @transform_3, window_bounds = array<i64: 1, 128>}, {pipeline_mode = #tpu.pipeline_mode<synchronous>, transform_indices = @transform_4, window_bounds = array<i64: 128, 128>}, {pipeline_mode = #tpu.pipeline_mode<synchronous>, transform_indices = @transform_5, window_bounds = array<i64: 1, 128>}, {pipeline_mode = #tpu.pipeline_mode<synchronous>, transform_indices = @transform_6, window_bounds = array<i64: 4, 128>}]} {
    %c0_i32 = arith.constant 0 : i32
    %0 = arith.cmpi eq, %arg0, %c0_i32 : i32
    %1 = arith.extui %0 : i1 to i32
    %c0_i32_0 = arith.constant 0 : i32
    %2 = arith.cmpi ne, %1, %c0_i32_0 : i32
    scf.if %2 {
      %cst_22 = arith.constant 0.000000e+00 : f32
      %57 = vector.broadcast %cst_22 : f32 to vector<4x128xf32>
      %c0_23 = arith.constant 0 : index
      %c0_24 = arith.constant 0 : index
      %58 = vector.load %arg8[%c0_23, %c0_24] : memref<4x128xf32, #tpu.memory_space<vmem>>, vector<4x128xf32>
      tpu.vector_store %arg8[%c0_23, %c0_24], %57 {strides = array<i32>} : memref<4x128xf32, #tpu.memory_space<vmem>>, vector<4x128xf32>,
    } else {
    }
    %c0 = arith.constant 0 : index
    %c0_1 = arith.constant 0 : index
    %c0_2 = arith.constant 0 : index
    %3 = vector.load %arg1[%c0, %c0_1, %c0_2] : memref<4x8x24xf32, #tpu.memory_space<vmem>>, vector<4x8x24xf32>
    %4 = vector.shape_cast %3 : vector<4x8x24xf32> to vector<32x24xf32>
    %c0_3 = arith.constant 0 : index
    %c0_4 = arith.constant 0 : index
    %5 = vector.load %arg2[%c0_3, %c0_4] : memref<24x128xf32, #tpu.memory_space<vmem>>, vector<24x128xf32>
    %cst = arith.constant dense<0.000000e+00> : vector<32x128xf32>
    %6 = tpu.matmul %4, %5, %cst {dimension_numbers = #tpu.dot_dimension_numbers<[1], [0], [0], [1], [0, 0, 1, 1], [], []>} : vector<32x24xf32>, vector<24x128xf32>, vector<32x128xf32> -> vector<32x128xf32>
    %c0_5 = arith.constant 0 : index
    %c0_6 = arith.constant 0 : index
    %7 = vector.load %arg4[%c0_5, %c0_6] : memref<1x128xf32, #tpu.memory_space<vmem>>, vector<1x128xf32>
    %8 = vector.broadcast %7 : vector<1x128xf32> to vector<32x128xf32>
    %9 = arith.addf %6, %8 : vector<32x128xf32>
    %10 = vector.shape_cast %9 : vector<32x128xf32> to vector<4x8x128xf32>
    %c0_7 = arith.constant 0 : index
    %c0_8 = arith.constant 0 : index
    %11 = vector.load %arg3[%c0_7, %c0_8] : memref<128x128xf32, #tpu.memory_space<vmem>>, vector<128x128xf32>
    %c0_9 = arith.constant 0 : index
    %c0_10 = arith.constant 0 : index
    %12 = vector.load %arg8[%c0_9, %c0_10] : memref<4x128xf32, #tpu.memory_space<vmem>>, vector<4x128xf32>
    %cst_11 = arith.constant dense<0.000000e+00> : vector<4x128xf32>
    %13 = tpu.matmul %12, %11, %cst_11 {dimension_numbers = #tpu.dot_dimension_numbers<[1], [0], [0], [1], [0, 0, 1, 1], [], []>} : vector<4x128xf32>, vector<128x128xf32>, vector<4x128xf32> -> vector<4x128xf32>
    %14 = vector.extract_strided_slice %10 {offsets = [0, 0, 0], sizes = [4, 1, 128], strides = [1, 1, 1]} : vector<4x8x128xf32> to vector<4x1x128xf32>
    %15 = vector.shape_cast %14 : vector<4x1x128xf32> to vector<4x128xf32>
    %16 = arith.addf %13, %15 : vector<4x128xf32>
    %17 = math.tanh %16 : vector<4x128xf32>
    %cst_12 = arith.constant dense<0.000000e+00> : vector<4x128xf32>
    %18 = tpu.matmul %17, %11, %cst_12 {dimension_numbers = #tpu.dot_dimension_numbers<[1], [0], [0], [1], [0, 0, 1, 1], [], []>} : vector<4x128xf32>, vector<128x128xf32>, vector<4x128xf32> -> vector<4x128xf32>
    %19 = vector.extract_strided_slice %10 {offsets = [0, 1, 0], sizes = [4, 1, 128], strides = [1, 1, 1]} : vector<4x8x128xf32> to vector<4x1x128xf32>
    %20 = vector.shape_cast %19 : vector<4x1x128xf32> to vector<4x128xf32>
    %21 = arith.addf %18, %20 : vector<4x128xf32>
    %22 = math.tanh %21 : vector<4x128xf32>
    %cst_13 = arith.constant dense<0.000000e+00> : vector<4x128xf32>
    %23 = tpu.matmul %22, %11, %cst_13 {dimension_numbers = #tpu.dot_dimension_numbers<[1], [0], [0], [1], [0, 0, 1, 1], [], []>} : vector<4x128xf32>, vector<128x128xf32>, vector<4x128xf32> -> vector<4x128xf32>
    %24 = vector.extract_strided_slice %10 {offsets = [0, 2, 0], sizes = [4, 1, 128], strides = [1, 1, 1]} : vector<4x8x128xf32> to vector<4x1x128xf32>
    %25 = vector.shape_cast %24 : vector<4x1x128xf32> to vector<4x128xf32>
    %26 = arith.addf %23, %25 : vector<4x128xf32>
    %27 = math.tanh %26 : vector<4x128xf32>
    %cst_14 = arith.constant dense<0.000000e+00> : vector<4x128xf32>
    %28 = tpu.matmul %27, %11, %cst_14 {dimension_numbers = #tpu.dot_dimension_numbers<[1], [0], [0], [1], [0, 0, 1, 1], [], []>} : vector<4x128xf32>, vector<128x128xf32>, vector<4x128xf32> -> vector<4x128xf32>
    %29 = vector.extract_strided_slice %10 {offsets = [0, 3, 0], sizes = [4, 1, 128], strides = [1, 1, 1]} : vector<4x8x128xf32> to vector<4x1x128xf32>
    %30 = vector.shape_cast %29 : vector<4x1x128xf32> to vector<4x128xf32>
    %31 = arith.addf %28, %30 : vector<4x128xf32>
    %32 = math.tanh %31 : vector<4x128xf32>
    %cst_15 = arith.constant dense<0.000000e+00> : vector<4x128xf32>
    %33 = tpu.matmul %32, %11, %cst_15 {dimension_numbers = #tpu.dot_dimension_numbers<[1], [0], [0], [1], [0, 0, 1, 1], [], []>} : vector<4x128xf32>, vector<128x128xf32>, vector<4x128xf32> -> vector<4x128xf32>
    %34 = vector.extract_strided_slice %10 {offsets = [0, 4, 0], sizes = [4, 1, 128], strides = [1, 1, 1]} : vector<4x8x128xf32> to vector<4x1x128xf32>
    %35 = vector.shape_cast %34 : vector<4x1x128xf32> to vector<4x128xf32>
    %36 = arith.addf %33, %35 : vector<4x128xf32>
    %37 = math.tanh %36 : vector<4x128xf32>
    %cst_16 = arith.constant dense<0.000000e+00> : vector<4x128xf32>
    %38 = tpu.matmul %37, %11, %cst_16 {dimension_numbers = #tpu.dot_dimension_numbers<[1], [0], [0], [1], [0, 0, 1, 1], [], []>} : vector<4x128xf32>, vector<128x128xf32>, vector<4x128xf32> -> vector<4x128xf32>
    %39 = vector.extract_strided_slice %10 {offsets = [0, 5, 0], sizes = [4, 1, 128], strides = [1, 1, 1]} : vector<4x8x128xf32> to vector<4x1x128xf32>
    %40 = vector.shape_cast %39 : vector<4x1x128xf32> to vector<4x128xf32>
    %41 = arith.addf %38, %40 : vector<4x128xf32>
    %42 = math.tanh %41 : vector<4x128xf32>
    %cst_17 = arith.constant dense<0.000000e+00> : vector<4x128xf32>
    %43 = tpu.matmul %42, %11, %cst_17 {dimension_numbers = #tpu.dot_dimension_numbers<[1], [0], [0], [1], [0, 0, 1, 1], [], []>} : vector<4x128xf32>, vector<128x128xf32>, vector<4x128xf32> -> vector<4x128xf32>
    %44 = vector.extract_strided_slice %10 {offsets = [0, 6, 0], sizes = [4, 1, 128], strides = [1, 1, 1]} : vector<4x8x128xf32> to vector<4x1x128xf32>
    %45 = vector.shape_cast %44 : vector<4x1x128xf32> to vector<4x128xf32>
    %46 = arith.addf %43, %45 : vector<4x128xf32>
    %47 = math.tanh %46 : vector<4x128xf32>
    %cst_18 = arith.constant dense<0.000000e+00> : vector<4x128xf32>
    %48 = tpu.matmul %47, %11, %cst_18 {dimension_numbers = #tpu.dot_dimension_numbers<[1], [0], [0], [1], [0, 0, 1, 1], [], []>} : vector<4x128xf32>, vector<128x128xf32>, vector<4x128xf32> -> vector<4x128xf32>
    %49 = vector.extract_strided_slice %10 {offsets = [0, 7, 0], sizes = [4, 1, 128], strides = [1, 1, 1]} : vector<4x8x128xf32> to vector<4x1x128xf32>
    %50 = vector.shape_cast %49 : vector<4x1x128xf32> to vector<4x128xf32>
    %51 = arith.addf %48, %50 : vector<4x128xf32>
    %52 = math.tanh %51 : vector<4x128xf32>
    %c0_19 = arith.constant 0 : index
    %c0_20 = arith.constant 0 : index
    %53 = vector.load %arg8[%c0_19, %c0_20] : memref<4x128xf32, #tpu.memory_space<vmem>>, vector<4x128xf32>
    tpu.vector_store %arg8[%c0_19, %c0_20], %52 {strides = array<i32>} : memref<4x128xf32, #tpu.memory_space<vmem>>, vector<4x128xf32>,
    %c1_i32 = arith.constant 1 : i32
    %54 = arith.cmpi eq, %arg0, %c1_i32 : i32
    %55 = arith.extui %54 : i1 to i32
    %c0_i32_21 = arith.constant 0 : i32
    %56 = arith.cmpi ne, %55, %c0_i32_21 : i32
    scf.if %56 {
      %c0_22 = arith.constant 0 : index
      %c0_23 = arith.constant 0 : index
      %57 = vector.load %arg5[%c0_22, %c0_23] : memref<128x128xf32, #tpu.memory_space<vmem>>, vector<128x128xf32>
      %cst_24 = arith.constant dense<0.000000e+00> : vector<4x128xf32>
      %58 = tpu.matmul %52, %57, %cst_24 {dimension_numbers = #tpu.dot_dimension_numbers<[1], [0], [0], [1], [0, 0, 1, 1], [], []>} : vector<4x128xf32>, vector<128x128xf32>, vector<4x128xf32> -> vector<4x128xf32>
      %c0_25 = arith.constant 0 : index
      %c0_26 = arith.constant 0 : index
      %59 = vector.load %arg6[%c0_25, %c0_26] : memref<1x128xf32, #tpu.memory_space<vmem>>, vector<1x128xf32>
      %60 = vector.broadcast %59 : vector<1x128xf32> to vector<4x128xf32>
      %61 = arith.addf %58, %60 : vector<4x128xf32>
      %c0_27 = arith.constant 0 : index
      %c0_28 = arith.constant 0 : index
      %62 = vector.load %arg7[%c0_27, %c0_28] : memref<4x128xf32, #tpu.memory_space<vmem>>, vector<4x128xf32>
      tpu.vector_store %arg7[%c0_27, %c0_28], %61 {strides = array<i32>} : memref<4x128xf32, #tpu.memory_space<vmem>>, vector<4x128xf32>,
    } else {
    }
    return
  }
  func.func @transform_0(%arg0: i32) -> (i32, i32, i32) {
    %c0_i32 = arith.constant 0 : i32
    %c0_i32_0 = arith.constant 0 : i32
    %c0_i32_1 = arith.constant 0 : i32
    return %c0_i32, %arg0, %c0_i32_0 : i32, i32, i32
  }
  func.func @transform_1(%arg0: i32) -> (i32, i32) {
    %c0_i32 = arith.constant 0 : i32
    %c0_i32_0 = arith.constant 0 : i32
    %c0_i32_1 = arith.constant 0 : i32
    return %c0_i32, %c0_i32_0 : i32, i32
  }
  func.func @transform_2(%arg0: i32) -> (i32, i32) {
    %c0_i32 = arith.constant 0 : i32
    %c0_i32_0 = arith.constant 0 : i32
    %c0_i32_1 = arith.constant 0 : i32
    return %c0_i32, %c0_i32_0 : i32, i32
  }
  func.func @transform_3(%arg0: i32) -> (i32, i32) {
    %c0_i32 = arith.constant 0 : i32
    %c0_i32_0 = arith.constant 0 : i32
    %c0_i32_1 = arith.constant 0 : i32
    return %c0_i32, %c0_i32_0 : i32, i32
  }
  func.func @transform_4(%arg0: i32) -> (i32, i32) {
    %c0_i32 = arith.constant 0 : i32
    %c0_i32_0 = arith.constant 0 : i32
    %c0_i32_1 = arith.constant 0 : i32
    return %c0_i32, %c0_i32_0 : i32, i32
  }
  func.func @transform_5(%arg0: i32) -> (i32, i32) {
    %c0_i32 = arith.constant 0 : i32
    %c0_i32_0 = arith.constant 0 : i32
    %c0_i32_1 = arith.constant 0 : i32
    return %c0_i32, %c0_i32_0 : i32, i32
  }
  func.func @transform_6(%arg0: i32) -> (i32, i32) {
    %c0_i32 = arith.constant 0 : i32
    %c0_i32_0 = arith.constant 0 : i32
    %c0_i32_1 = arith.constant 0 : i32
    return %c0_i32, %c0_i32_0 : i32, i32
  }
}

</mosaic_0001>

<llo_original>
// kernel: tpu_custom_call.1
$region0: #{tpu_custom_call.1}
  #allocation0 [shape = 'u32[]', space=smem, size = 0x4, offset = 0x4, fixed_abs, tag = 'smem constant byte address 0x4 - core index']
  #allocation1 [shape = 'u32[144,128]{1,0:T(1,128)}', space=vmem, size = 0x12000, scoped, tag = 'internal scratch']
  #allocation2 [shape = 'f32[4,128]{1,0:T(4,128)}', space=vmem, size = 0x800, scoped, tag = 'scratch operand']
  %s0 = inlined_call_operand.hbm [shape: f32[4,16,24], index: 0, kind: input, shape index: {}]
  %s1 = inlined_call_operand.hbm [shape: f32[24,128], index: 1, kind: input, shape index: {}]
  %s2 = inlined_call_operand.hbm [shape: f32[128,128], index: 2, kind: input, shape index: {}]
  %s3 = inlined_call_operand.vmem [shape: f32[1,128], index: 3, kind: input, shape index: {}]
  %s4 = inlined_call_operand.hbm [shape: f32[128,128], index: 4, kind: input, shape index: {}]
  %s5 = inlined_call_operand.vmem [shape: f32[1,128], index: 5, kind: input, shape index: {}]
  %s6 = inlined_call_operand.hbm [shape: f32[4,128], index: 6, kind: output, shape index: {}]
  %s7 = sld [smem:[#allocation0]]
  $region81: #{tpu_custom_call.1} parent=0
    _
  %s9 = ssub.s32 1, %s7
  %s10 = scalar_select 0, %s9, %s7
  $region1: #{tpu_custom_call.1} parent=0
    #allocation3 [shape = 'u8[32768]{0}', space=vmem, size = 0x8000, scoped, tag = 'input window, operand 0']
    #allocation4 [shape = 's32[2]{0}', space=sflag, size = 0x8, scoped, tag = 'scoped memory for tpu_custom_call.1']
    #allocation5 [shape = 's32[2]{0}', space=sflag, size = 0x8, scoped, tag = 'scoped memory for tpu_custom_call.1']
    #allocation6 [shape = 'u8[12288]{0}', space=vmem, size = 0x3000, scoped, tag = 'input window, operand 1, single buffered']
    #allocation7 [shape = 's32[1]{0}', space=sflag, size = 0x4, scoped, tag = 'scoped memory for tpu_custom_call.1']
    #allocation8 [shape = 'u8[65536]{0}', space=vmem, size = 0x10000, scoped, tag = 'input window, operand 2, single buffered']
    #allocation9 [shape = 'u8[65536]{0}', space=vmem, size = 0x10000, scoped, tag = 'input window, operand 4, single buffered']
    #allocation10 [shape = 's32[1]{0}', space=sflag, size = 0x4, scoped, tag = 'scoped memory for tpu_custom_call.1']
    #allocation11 [shape = 'u8[2048]{0}', space=vmem, size = 0x800, scoped, tag = 'output window, operand 0, single buffered']
    %11 = vsyncpa [#allocation4], 0
    %s12 = scalar_lea.sflag [#allocation4], 1
    %13 = vsyncpa %s12, 0
    %14 = vsyncpa [#allocation7], 0
    %15 = vsyncpa [#allocation10], 0
    %16 = vsyncpa [#allocation5], 0
    loop: start=0, step=1, limit=4
    $region2: #{tpu_custom_call.1} parent=1 // loop_pre_header
      _
    $region3: #{tpu_custom_call.1} parent=1 // loop_header
      %s18 = sphi 0, %s22
      %p19 = scmp.ge.s32.totalorder %s18, 4
      %s28 = sphi 0, %s30
      %s31 = sphi 0, %s28
      %s32 = sphi 0, %s31
      %s48 = sphi 0, %s32
      %s52 = sphi 0, %s52
      %s54 = sphi 0, %s52
      %s55 = sphi 0, %s54
      %s69 = sphi 0, %s55
      %s73 = sphi 0, %s73
      %s75 = sphi 0, %s73
      %s76 = sphi 0, %s75
      %s90 = sphi 0, %s76
      %s94 = sphi 0, %s94
      %s96 = sphi 0, %s94
      %s97 = sphi 0, %s96
      %s111 = sphi 0, %s97
      %s115 = sphi 0, %s115
      %s117 = sphi 0, %s115
      %s118 = sphi 0, %s117
      %s132 = sphi 0, %s118
      %s136 = sphi 0, %s136
      %s138 = sphi 0, %s136
      %s139 = sphi 0, %s138
      %s153 = sphi 0, %s139
      %s157 = sphi 0, %s157
      %s159 = sphi 0, %s157
      %s160 = sphi 0, %s159
      %s174 = sphi 0, %s160
    $region4: #{tpu_custom_call.1} parent=1 // loop_header_branch
      %21 = sbr.rel (%p19) target = $region8
    $region5: #{tpu_custom_call.1} parent=1 // loop_body
      %s23 = ssub.s32 %s18, 1
      %s24 = ssub.s32 %s18, 2
      %s25 = sadd.s32 %s18, 1
      %s26 = ssub.s32 %s18, %s25
      %p27 = scmp.eq.s32.totalorder %s26, 0
      %s29 = sadd.s32 %s28, 1
      %s30 = scalar_select %p27, %s28, %s29
      %p33 = pneg %p27
      %p34 = scmp.eq.s32.totalorder %s18, 1
      %p35 = por %p33, %p34
      %p36 = scmp.ne.s32.totalorder %s28, %s31
      %p37 = scmp.eq.s32.totalorder %s18, 0
      %p38 = por %p36, %p37
      %p39 = scmp.ne.s32.totalorder %s28, %s31
      %p40 = scmp.eq.s32.totalorder %s23, 1
      %p41 = por %p39, %p40
      %p42 = scmp.ne.s32.totalorder %s31, %s32
      %p43 = scmp.eq.s32.totalorder %s23, 0
      %p44 = por %p42, %p43
      %p45 = scmp.ne.s32.totalorder %s31, %s32
      %p46 = scmp.eq.s32.totalorder %s24, 1
      %p47 = por %p45, %p46
      %p49 = scmp.ne.s32.totalorder %s32, %s48
      %p50 = scmp.eq.s32.totalorder %s24, 0
      %p51 = por %p49, %p50
      %s53 = sadd.s32 %s52, 1
      %p56 = scmp.eq.s32.totalorder %s18, 1
      %p57 = scmp.ne.s32.totalorder %s52, %s54
      %p58 = scmp.eq.s32.totalorder %s18, 0
      %p59 = por %p57, %p58
      %p60 = scmp.ne.s32.totalorder %s52, %s54
      %p61 = scmp.eq.s32.totalorder %s23, 1
      %p62 = por %p60, %p61
      %p63 = scmp.ne.s32.totalorder %s54, %s55
      %p64 = scmp.eq.s32.totalorder %s23, 0
      %p65 = por %p63, %p64
      %p66 = scmp.ne.s32.totalorder %s54, %s55
      %p67 = scmp.eq.s32.totalorder %s24, 1
      %p68 = por %p66, %p67
      %p70 = scmp.ne.s32.totalorder %s55, %s69
      %p71 = scmp.eq.s32.totalorder %s24, 0
      %p72 = por %p70, %p71
      %s74 = sadd.s32 %s73, 1
      %p77 = scmp.eq.s32.totalorder %s18, 1
      %p78 = scmp.ne.s32.totalorder %s73, %s75
      %p79 = scmp.eq.s32.totalorder %s18, 0
      %p80 = por %p78, %p79
      %p81 = scmp.ne.s32.totalorder %s73, %s75
      %p82 = scmp.eq.s32.totalorder %s23, 1
      %p83 = por %p81, %p82
      %p84 = scmp.ne.s32.totalorder %s75, %s76
      %p85 = scmp.eq.s32.totalorder %s23, 0
      %p86 = por %p84, %p85
      %p87 = scmp.ne.s32.totalorder %s75, %s76
      %p88 = scmp.eq.s32.totalorder %s24, 1
      %p89 = por %p87, %p88
      %p91 = scmp.ne.s32.totalorder %s76, %s90
      %p92 = scmp.eq.s32.totalorder %s24, 0
      %p93 = por %p91, %p92
      %s95 = sadd.s32 %s94, 1
      %p98 = scmp.eq.s32.totalorder %s18, 1
      %p99 = scmp.ne.s32.totalorder %s94, %s96
      %p100 = scmp.eq.s32.totalorder %s18, 0
      %p101 = por %p99, %p100
      %p102 = scmp.ne.s32.totalorder %s94, %s96
      %p103 = scmp.eq.s32.totalorder %s23, 1
      %p104 = por %p102, %p103
      %p105 = scmp.ne.s32.totalorder %s96, %s97
      %p106 = scmp.eq.s32.totalorder %s23, 0
      %p107 = por %p105, %p106
      %p108 = scmp.ne.s32.totalorder %s96, %s97
      %p109 = scmp.eq.s32.totalorder %s24, 1
      %p110 = por %p108, %p109
      %p112 = scmp.ne.s32.totalorder %s97, %s111
      %p113 = scmp.eq.s32.totalorder %s24, 0
      %p114 = por %p112, %p113
      %s116 = sadd.s32 %s115, 1
      %p119 = scmp.eq.s32.totalorder %s18, 1
      %p120 = scmp.ne.s32.totalorder %s115, %s117
      %p121 = scmp.eq.s32.totalorder %s18, 0
      %p122 = por %p120, %p121
      %p123 = scmp.ne.s32.totalorder %s115, %s117
      %p124 = scmp.eq.s32.totalorder %s23, 1
      %p125 = por %p123, %p124
      %p126 = scmp.ne.s32.totalorder %s117, %s118
      %p127 = scmp.eq.s32.totalorder %s23, 0
      %p128 = por %p126, %p127
      %p129 = scmp.ne.s32.totalorder %s117, %s118
      %p130 = scmp.eq.s32.totalorder %s24, 1
      %p131 = por %p129, %p130
      %p133 = scmp.ne.s32.totalorder %s118, %s132
      %p134 = scmp.eq.s32.totalorder %s24, 0
      %p135 = por %p133, %p134
      %s137 = sadd.s32 %s136, 1
      %p140 = scmp.eq.s32.totalorder %s18, 1
      %p141 = scmp.ne.s32.totalorder %s136, %s138
      %p142 = scmp.eq.s32.totalorder %s18, 0
      %p143 = por %p141, %p142
      %p144 = scmp.ne.s32.totalorder %s136, %s138
      %p145 = scmp.eq.s32.totalorder %s23, 1
      %p146 = por %p144, %p145
      %p147 = scmp.ne.s32.totalorder %s138, %s139
      %p148 = scmp.eq.s32.totalorder %s23, 0
      %p149 = por %p147, %p148
      %p150 = scmp.ne.s32.totalorder %s138, %s139
      %p151 = scmp.eq.s32.totalorder %s24, 1
      %p152 = por %p150, %p151
      %p154 = scmp.ne.s32.totalorder %s139, %s153
      %p155 = scmp.eq.s32.totalorder %s24, 0
      %p156 = por %p154, %p155
      %s158 = sadd.s32 %s157, 1
      %p161 = scmp.eq.s32.totalorder %s18, 1
      %p162 = scmp.ne.s32.totalorder %s157, %s159
      %p163 = scmp.eq.s32.totalorder %s18, 0
      %p164 = por %p162, %p163
      %p165 = scmp.ne.s32.totalorder %s157, %s159
      %p166 = scmp.eq.s32.totalorder %s23, 1
      %p167 = por %p165, %p166
      %p168 = scmp.ne.s32.totalorder %s159, %s160
      %p169 = scmp.eq.s32.totalorder %s23, 0
      %p170 = por %p168, %p169
      %p171 = scmp.ne.s32.totalorder %s159, %s160
      %p172 = scmp.eq.s32.totalorder %s24, 1
      %p173 = por %p171, %p172
      %p175 = scmp.ne.s32.totalorder %s160, %s174
      %p176 = scmp.eq.s32.totalorder %s24, 0
      %p177 = por %p175, %p176
      %p178 = scmp.le.s32.totalorder 1, %s18
      %p179 = scmp.lt.s32.totalorder %s18, 3
      %p180 = pnand %p178, %p179
      %p181 = pneg %p180
      // Predicated region
      $region9: #{tpu_custom_call.1} parent=5 // pred_check
        _
      $region10: #{tpu_custom_call.1} parent=5 // pred_check_branch
        %183 = sbr.rel (%p180) target = $region12
      $region11: #{tpu_custom_call.1} parent=5 // pred_region
        %s184 = ssub.s32 %s18, 1
        // Predicated region
        $region13: #{tpu_custom_call.1} parent=11 // pred_check
          %p185 = pneg %p65
        $region14: #{tpu_custom_call.1} parent=11 // pred_check_branch
          %187 = sbr.rel (%p185) target = $region16
        $region15: #{tpu_custom_call.1} parent=11 // pred_region
          %s189 = ssub.s32 384, 384
          %190 = vsyncadd [#allocation7], %s189
          %s191 = sshll.u32 [#allocation6], 4
          %s192 = int_to_ptr.vmem [resolvable:$true] %s191
          %197 = dma.hbm_to_vmem [thread:$0]  %s1, 384, %s192, [#allocation7], 128, 128, 8
        $region16: #{tpu_custom_call.1} parent=11 // pred_fallthru
          _
        // Predicated region
        $region17: #{tpu_custom_call.1} parent=11 // pred_check
          %p198 = pneg %p86
        $region18: #{tpu_custom_call.1} parent=11 // pred_check_branch
          %200 = sbr.rel (%p198) target = $region20
        $region19: #{tpu_custom_call.1} parent=11 // pred_region
          %s202 = ssub.s32 2048, 2048
          %203 = vsyncadd [#allocation7], %s202
          %s204 = sshll.u32 [#allocation8], 4
          %s205 = int_to_ptr.vmem [resolvable:$true] %s204
          %210 = dma.hbm_to_vmem [thread:$0]  %s2, 2048, %s205, [#allocation7], 128, 128, 8
        $region20: #{tpu_custom_call.1} parent=11 // pred_fallthru
          _
        // Predicated region
        $region21: #{tpu_custom_call.1} parent=11 // pred_check
          %p211 = pneg %p107
        $region22: #{tpu_custom_call.1} parent=11 // pred_check_branch
          %213 = sbr.rel (%p211) target = $region24
        $region23: #{tpu_custom_call.1} parent=11 // pred_region
          _
        $region24: #{tpu_custom_call.1} parent=11 // pred_fallthru
          _
        // Predicated region
        $region25: #{tpu_custom_call.1} parent=11 // pred_check
          %p214 = pneg %p128
        $region26: #{tpu_custom_call.1} parent=11 // pred_check_branch
          %216 = sbr.rel (%p214) target = $region28
        $region27: #{tpu_custom_call.1} parent=11 // pred_region
          %s218 = ssub.s32 2048, 2048
          %219 = vsyncadd [#allocation10], %s218
          %s220 = sshll.u32 [#allocation9], 4
          %s221 = int_to_ptr.vmem [resolvable:$true] %s220
          %226 = dma.hbm_to_vmem [thread:$0]  %s4, 2048, %s221, [#allocation10], 128, 128, 8
        $region28: #{tpu_custom_call.1} parent=11 // pred_fallthru
          _
        // Predicated region
        $region29: #{tpu_custom_call.1} parent=11 // pred_check
          %p227 = pneg %p149
        $region30: #{tpu_custom_call.1} parent=11 // pred_check_branch
          %229 = sbr.rel (%p227) target = $region32
        $region31: #{tpu_custom_call.1} parent=11 // pred_region
          _
        $region32: #{tpu_custom_call.1} parent=11 // pred_fallthru
          _
      $region12: #{tpu_custom_call.1} parent=5 // pred_fallthru
        _
      %p230 = scmp.lt.s32.totalorder %s18, 2
      // Predicated region
      $region33: #{tpu_custom_call.1} parent=5 // pred_check
        %p231 = pneg %p230
      $region34: #{tpu_custom_call.1} parent=5 // pred_check_branch
        %233 = sbr.rel (%p231) target = $region36
      $region35: #{tpu_custom_call.1} parent=5 // pred_region
        // Predicated region
        $region37: #{tpu_custom_call.1} parent=35 // pred_check
          %p234 = pneg %p38
        $region38: #{tpu_custom_call.1} parent=35 // pred_check_branch
          %236 = sbr.rel (%p234) target = $region40
        $region39: #{tpu_custom_call.1} parent=35 // pred_region
          %s237 = sand.u32 %s28, 1
          %s238 = scalar_lea.sflag [#allocation4], %s237
          %s239 = sand.u32 %s28, 1
          %s240 = smul.addr %s239, 32
          %s241 = scalar_lea.vmem [#allocation3], %s240
          %s243 = ssub.s32 512, 512
          %244 = vsyncadd %s238, %s243
          %s245 = smul.addr %s18, 128
          %s246 = scalar_lea.hbm %s0, %s245
          %s247 = sshll.u32 %s241, 4
          %s248 = int_to_ptr.vmem [resolvable:$true] %s247
          %253 = dma.hbm_to_vmem [thread:$0]  %s246, 512, %s248, %s238, 256, 128, 8
        $region40: #{tpu_custom_call.1} parent=35 // pred_fallthru
          _
      $region36: #{tpu_custom_call.1} parent=5 // pred_fallthru
        _
      %p254 = scmp.le.s32.totalorder 1, %s18
      %p255 = scmp.lt.s32.totalorder %s18, 3
      %p256 = pnand %p254, %p255
      %p257 = pneg %p256
      // Predicated region
      $region41: #{tpu_custom_call.1} parent=5 // pred_check
        _
      $region42: #{tpu_custom_call.1} parent=5 // pred_check_branch
        %259 = sbr.rel (%p256) target = $region44
      $region43: #{tpu_custom_call.1} parent=5 // pred_region
        %s260 = ssub.s32 %s18, 1
        %s261 = sand.u32 %s31, 1
        %s262 = scalar_lea.sflag [#allocation4], %s261
        %s263 = sand.u32 %s31, 1
        %s264 = smul.addr %s263, 32
        %s265 = scalar_lea.vmem [#allocation3], %s264
        // Predicated region
        $region45: #{tpu_custom_call.1} parent=43 // pred_check
          %p266 = pneg %p44
        $region46: #{tpu_custom_call.1} parent=43 // pred_check_branch
          %268 = sbr.rel (%p266) target = $region48
        $region47: #{tpu_custom_call.1} parent=43 // pred_region
          %269 = dma.done %s262, 512
        $region48: #{tpu_custom_call.1} parent=43 // pred_fallthru
          _
        // Predicated region
        $region49: #{tpu_custom_call.1} parent=43 // pred_check
          %p270 = pneg %p65
        $region50: #{tpu_custom_call.1} parent=43 // pred_check_branch
          %272 = sbr.rel (%p270) target = $region52
        $region51: #{tpu_custom_call.1} parent=43 // pred_region
          %273 = dma.done [#allocation7], 384
        $region52: #{tpu_custom_call.1} parent=43 // pred_fallthru
          _
        // Predicated region
        $region53: #{tpu_custom_call.1} parent=43 // pred_check
          %p274 = pneg %p86
        $region54: #{tpu_custom_call.1} parent=43 // pred_check_branch
          %276 = sbr.rel (%p274) target = $region56
        $region55: #{tpu_custom_call.1} parent=43 // pred_region
          %277 = dma.done [#allocation7], 2048
        $region56: #{tpu_custom_call.1} parent=43 // pred_fallthru
          _
        // Predicated region
        $region57: #{tpu_custom_call.1} parent=43 // pred_check
          %p278 = pneg %p128
        $region58: #{tpu_custom_call.1} parent=43 // pred_check_branch
          %280 = sbr.rel (%p278) target = $region60
        $region59: #{tpu_custom_call.1} parent=43 // pred_region
          %281 = dma.done [#allocation10], 2048
        $region60: #{tpu_custom_call.1} parent=43 // pred_fallthru
          _
        %s282 = sand.u32 %s31, 1
        %s283 = scalar_lea.sflag [#allocation4], %s282
        %s284 = sand.u32 %s31, 1
        %s285 = smul.addr %s284, 32
        %s286 = scalar_lea.vmem [#allocation3], %s285
        %p287 = pneg %p44
        %p288 = pneg %p41
        %p289 = pneg %p65
        %p290 = pneg %p62
        %p291 = pneg %p86
        %p292 = pneg %p83
        %p293 = pneg %p107
        %p294 = pneg %p104
        %p295 = pneg %p128
        %p296 = pneg %p125
        %p297 = pneg %p149
        %p298 = pneg %p146
        %p299 = pneg %p170
        %p300 = pneg %p167
        %p301 = scmp.eq.s32.totalorder %s23, 0
        // Predicated region
        $region61: #{tpu_custom_call.1} parent=43 // pred_check
          %p302 = pneg %p301
        $region62: #{tpu_custom_call.1} parent=43 // pred_check_branch
          %304 = sbr.rel (%p302) target = $region64
        $region63: #{tpu_custom_call.1} parent=43 // pred_region
          %305 = vst [vmem:[#allocation2] sm:$0xf] 0.0
        $region64: #{tpu_custom_call.1} parent=43 // pred_fallthru
          _
        %v306 = vld [vmem:[%s265] sm:$0xff]
        %v307 = vld [vmem:[%s265 + $0x8] sm:$0xff]
        %v308 = vld [vmem:[%s265 + $0x10] sm:$0xff]
        %v309 = vld [vmem:[%s265 + $0x18] sm:$0xff]
        %v310 = vld [vmem:[#allocation6] sm:$0xff]
        %v311 = vld [vmem:[#allocation6 + $0x8] sm:$0xff]
        %v312 = vld [vmem:[#allocation6 + $0x10] sm:$0xff]
        %v313 = vld [vmem:[%s3] sm:$0x1]
        %v315 = vlaneseq
        %v316 = vshrl.u32 %v315, 7
        %v317 = vsub.s32 0, %v316
        %v318 = vrot.slane %v313, %v317
        %vm320 = vcmask 195584
        %v322 = vsel %vm320, %v306, 0
        %v325 = vsel %vm320, %v307, 0
        %v328 = vsel %vm320, %v308, 0
        %v331 = vsel %vm320, %v309, 0
        %333 = vmatprep.subr.mxu0 0.0
        %334 = vmatpush1.msra.mxu0 0.0
        %335 = vmatprep.subr.mxu0 0.0
        %336 = vmatpush1.msra.mxu0 0.0
        %337 = vmatprep.subr.mxu0 0.0
        %338 = vmatpush1.msra.mxu0 0.0
        %339 = vmatprep.subr.mxu0 0.0
        %340 = vmatpush1.msra.mxu0 0.0
        %341 = vmatprep.subr.mxu0 0.0
        %342 = vmatpush1.msra.mxu0 0.0
        %343 = vmatprep.subr.mxu0 0.0
        %344 = vmatpush1.msra.mxu0 0.0
        %345 = vmatprep.subr.mxu0 0.0
        %346 = vmatpush1.msra.mxu0 0.0
        %347 = vmatprep.subr.mxu0 0.0
        %348 = vmatpush1.msra.mxu0 0.0
        %349 = vmatprep.subr.mxu0 0.0
        %350 = vmatpush1.msra.mxu0 0.0
        %351 = vmatprep.subr.mxu0 0.0
        %352 = vmatpush1.msra.mxu0 0.0
        %353 = vmatprep.subr.mxu0 0.0
        %354 = vmatpush1.msra.mxu0 0.0
        %355 = vmatprep.subr.mxu0 0.0
        %356 = vmatpush1.msra.mxu0 0.0
        %357 = vmatprep.subr.mxu0 0.0
        %358 = vmatpush1.msra.mxu0 0.0
        %359 = vmatprep.subr.mxu0 0.0
        %360 = vmatpush1.msra.mxu0 %v312
        %361 = vmatprep.subr.mxu0 0.0
        %362 = vmatpush1.msra.mxu0 %v311
        %363 = vmatprep.subr.mxu0 0.0
        %364 = vmatpush1.msra.mxu0 %v310
        %365 = vmatprep.subr.mxu0 0.0
        %366 = vmatpush2.msra.mxu0 0.0
        %367 = vmatprep.subr.mxu0 0.0
        %368 = vmatpush2.msra.mxu0 0.0
        %369 = vmatprep.subr.mxu0 0.0
        %370 = vmatpush2.msra.mxu0 0.0
        %371 = vmatprep.subr.mxu0 0.0
        %372 = vmatpush2.msra.mxu0 0.0
        %373 = vmatprep.subr.mxu0 0.0
        %374 = vmatpush2.msra.mxu0 0.0
        %375 = vmatprep.subr.mxu0 0.0
        %376 = vmatpush2.msra.mxu0 0.0
        %377 = vmatprep.subr.mxu0 0.0
        %378 = vmatpush2.msra.mxu0 0.0
        %379 = vmatprep.subr.mxu0 0.0
        %380 = vmatpush2.msra.mxu0 0.0
        %381 = vmatprep.subr.mxu0 0.0
        %382 = vmatpush2.msra.mxu0 0.0
        %383 = vmatprep.subr.mxu0 0.0
        %384 = vmatpush2.msra.mxu0 0.0
        %385 = vmatprep.subr.mxu0 0.0
        %386 = vmatpush2.msra.mxu0 0.0
        %387 = vmatprep.subr.mxu0 0.0
        %388 = vmatpush2.msra.mxu0 0.0
        %389 = vmatprep.subr.mxu0 0.0
        %390 = vmatpush2.msra.mxu0 0.0
        %391 = vmatprep.subr.mxu0 0.0
        %392 = vmatpush2.msra.mxu0 0.0
        %393 = vmatprep.subr.mxu0 0.0
        %394 = vmatpush2.msra.mxu0 0.0
        %395 = vmatprep.subr.mxu0 0.0
        %396 = vmatpush2.msra.mxu0 0.0
        %397 = vmatprep.mubr.f32.mxu0 0.0
        %398 = vmatmul.mubr.f32.gmra.mxu0 %v322
        %v399 = vpop.f32.mrf.mxu0
        %v400 = vadd.f32 %v318, %v399
        %v401 = vpop.f32.mrf.mxu0
        %402 = vmatprep.mubr.f32.mxu0 0.0
        %403 = vmatmul.mubr.f32.gmra.mxu0 %v325
        %v404 = vpop.f32.mrf.mxu0
        %v405 = vadd.f32 %v318, %v404
        %v406 = vpop.f32.mrf.mxu0
        %407 = vmatprep.mubr.f32.mxu0 0.0
        %408 = vmatmul.mubr.f32.gmra.mxu0 %v328
        %v409 = vpop.f32.mrf.mxu0
        %v410 = vadd.f32 %v318, %v409
        %v411 = vpop.f32.mrf.mxu0
        %412 = vmatprep.mubr.f32.mxu0 0.0
        %413 = vmatmul.mubr.f32.gmra.mxu0 %v331
        %v414 = vpop.f32.mrf.mxu0
        %v415 = vadd.f32 %v318, %v414
        %v416 = vpop.f32.mrf.mxu0
        %417 = vdwg.mxu0
        %v418 = vld [vmem:[#allocation8] sm:$0xff]
        %v419 = vld [vmem:[#allocation8 + $0x8] sm:$0xff]
        %v420 = vld [vmem:[#allocation8 + $0x10] sm:$0xff]
        %v421 = vld [vmem:[#allocation8 + $0x18] sm:$0xff]
        %v422 = vld [vmem:[#allocation8 + $0x20] sm:$0xff]
        %v423 = vld [vmem:[#allocation8 + $0x28] sm:$0xff]
        %v424 = vld [vmem:[#allocation8 + $0x30] sm:$0xff]
        %v425 = vld [vmem:[#allocation8 + $0x38] sm:$0xff]
        %v426 = vld [vmem:[#allocation8 + $0x40] sm:$0xff]
        %v427 = vld [vmem:[#allocation8 + $0x48] sm:$0xff]
        %v428 = vld [vmem:[#allocation8 + $0x50] sm:$0xff]
        %v429 = vld [vmem:[#allocation8 + $0x58] sm:$0xff]
        %v430 = vld [vmem:[#allocation8 + $0x60] sm:$0xff]
        %v431 = vld [vmem:[#allocation8 + $0x68] sm:$0xff]
        %v432 = vld [vmem:[#allocation8 + $0x70] sm:$0xff]
        %v433 = vld [vmem:[#allocation8 + $0x78] sm:$0xff]
        %v434 = vld [vmem:[#allocation2] sm:$0xf]
        %v439 = vrot.slane %v405, 7
        %vm440 = vcmask 1041409
        %v441 = vsel %vm440, %v439, %v400
        %v442 = vrot.slane %v410, 6
        %vm443 = vcmask 1042434
        %v444 = vsel %vm443, %v442, %v441
        %v445 = vrot.slane %v415, 5
        %vm446 = vcmask 1043459
        %v447 = vsel %vm446, %v445, %v444
        %449 = vmatprep.subr.mxu0 0.0
        %450 = vmatpush1.msra.mxu0 %v433
        %451 = vmatprep.subr.mxu0 0.0
        %452 = vmatpush1.msra.mxu0 %v432
        %453 = vmatprep.subr.mxu0 0.0
        %454 = vmatpush1.msra.mxu0 %v431
        %455 = vmatprep.subr.mxu0 0.0
        %456 = vmatpush1.msra.mxu0 %v430
        %457 = vmatprep.subr.mxu0 0.0
        %458 = vmatpush1.msra.mxu0 %v429
        %459 = vmatprep.subr.mxu0 0.0
        %460 = vmatpush1.msra.mxu0 %v428
        %461 = vmatprep.subr.mxu0 0.0
        %462 = vmatpush1.msra.mxu0 %v427
        %463 = vmatprep.subr.mxu0 0.0
        %464 = vmatpush1.msra.mxu0 %v426
        %465 = vmatprep.subr.mxu0 0.0
        %466 = vmatpush1.msra.mxu0 %v425
        %467 = vmatprep.subr.mxu0 0.0
        %468 = vmatpush1.msra.mxu0 %v424
        %469 = vmatprep.subr.mxu0 0.0
        %470 = vmatpush1.msra.mxu0 %v423
        %471 = vmatprep.subr.mxu0 0.0
        %472 = vmatpush1.msra.mxu0 %v422
        %473 = vmatprep.subr.mxu0 0.0
        %474 = vmatpush1.msra.mxu0 %v421
        %475 = vmatprep.subr.mxu0 0.0
        %476 = vmatpush1.msra.mxu0 %v420
        %477 = vmatprep.subr.mxu0 0.0
        %478 = vmatpush1.msra.mxu0 %v419
        %479 = vmatprep.subr.mxu0 0.0
        %480 = vmatpush1.msra.mxu0 %v418
        %481 = vmatprep.subr.mxu0 0.0
        %482 = vmatpush2.msra.mxu0 0.0
        %483 = vmatprep.subr.mxu0 0.0
        %484 = vmatpush2.msra.mxu0 0.0
        %485 = vmatprep.subr.mxu0 0.0
        %486 = vmatpush2.msra.mxu0 0.0
        %487 = vmatprep.subr.mxu0 0.0
        %488 = vmatpush2.msra.mxu0 0.0
        %489 = vmatprep.subr.mxu0 0.0
        %490 = vmatpush2.msra.mxu0 0.0
        %491 = vmatprep.subr.mxu0 0.0
        %492 = vmatpush2.msra.mxu0 0.0
        %493 = vmatprep.subr.mxu0 0.0
        %494 = vmatpush2.msra.mxu0 0.0
        %495 = vmatprep.subr.mxu0 0.0
        %496 = vmatpush2.msra.mxu0 0.0
        %497 = vmatprep.subr.mxu0 0.0
        %498 = vmatpush2.msra.mxu0 0.0
        %499 = vmatprep.subr.mxu0 0.0
        %500 = vmatpush2.msra.mxu0 0.0
        %501 = vmatprep.subr.mxu0 0.0
        %502 = vmatpush2.msra.mxu0 0.0
        %503 = vmatprep.subr.mxu0 0.0
        %504 = vmatpush2.msra.mxu0 0.0
        %505 = vmatprep.subr.mxu0 0.0
        %506 = vmatpush2.msra.mxu0 0.0
        %507 = vmatprep.subr.mxu0 0.0
        %508 = vmatpush2.msra.mxu0 0.0
        %509 = vmatprep.subr.mxu0 0.0
        %510 = vmatpush2.msra.mxu0 0.0
        %511 = vmatprep.subr.mxu0 0.0
        %512 = vmatpush2.msra.mxu0 0.0
        %513 = vmatprep.mubr.f32.mxu0 0.0
        %514 = vmatmul.mubr.f32.gmra.mxu0 %v434
        %v515 = vpop.f32.mrf.mxu0
        %v516 = vadd.f32 %v447, %v515
        %v517 = vpop.f32.mrf.mxu0
        %518 = vdwg.mxu0
        %v519 = vtanh.pop %v516
        %v520 = vrot.slane %v400, 1
        %v521 = vsel %vm440, %v405, %v520
        %v522 = vrot.slane %v410, 7
        %v523 = vsel %vm443, %v522, %v521
        %v524 = vrot.slane %v415, 6
        %v525 = vsel %vm446, %v524, %v523
        %527 = vmatprep.subr.mxu0 0.0
        %528 = vmatpush1.msra.mxu0 %v433
        %529 = vmatprep.subr.mxu0 0.0
        %530 = vmatpush1.msra.mxu0 %v432
        %531 = vmatprep.subr.mxu0 0.0
        %532 = vmatpush1.msra.mxu0 %v431
        %533 = vmatprep.subr.mxu0 0.0
        %534 = vmatpush1.msra.mxu0 %v430
        %535 = vmatprep.subr.mxu0 0.0
        %536 = vmatpush1.msra.mxu0 %v429
        %537 = vmatprep.subr.mxu0 0.0
        %538 = vmatpush1.msra.mxu0 %v428
        %539 = vmatprep.subr.mxu0 0.0
        %540 = vmatpush1.msra.mxu0 %v427
        %541 = vmatprep.subr.mxu0 0.0
        %542 = vmatpush1.msra.mxu0 %v426
        %543 = vmatprep.subr.mxu0 0.0
        %544 = vmatpush1.msra.mxu0 %v425
        %545 = vmatprep.subr.mxu0 0.0
        %546 = vmatpush1.msra.mxu0 %v424
        %547 = vmatprep.subr.mxu0 0.0
        %548 = vmatpush1.msra.mxu0 %v423
        %549 = vmatprep.subr.mxu0 0.0
        %550 = vmatpush1.msra.mxu0 %v422
        %551 = vmatprep.subr.mxu0 0.0
        %552 = vmatpush1.msra.mxu0 %v421
        %553 = vmatprep.subr.mxu0 0.0
        %554 = vmatpush1.msra.mxu0 %v420
        %555 = vmatprep.subr.mxu0 0.0
        %556 = vmatpush1.msra.mxu0 %v419
        %557 = vmatprep.subr.mxu0 0.0
        %558 = vmatpush1.msra.mxu0 %v418
        %559 = vmatprep.subr.mxu0 0.0
        %560 = vmatpush2.msra.mxu0 0.0
        %561 = vmatprep.subr.mxu0 0.0
        %562 = vmatpush2.msra.mxu0 0.0
        %563 = vmatprep.subr.mxu0 0.0
        %564 = vmatpush2.msra.mxu0 0.0
        %565 = vmatprep.subr.mxu0 0.0
        %566 = vmatpush2.msra.mxu0 0.0
        %567 = vmatprep.subr.mxu0 0.0
        %568 = vmatpush2.msra.mxu0 0.0
        %569 = vmatprep.subr.mxu0 0.0
        %570 = vmatpush2.msra.mxu0 0.0
        %571 = vmatprep.subr.mxu0 0.0
        %572 = vmatpush2.msra.mxu0 0.0
        %573 = vmatprep.subr.mxu0 0.0
        %574 = vmatpush2.msra.mxu0 0.0
        %575 = vmatprep.subr.mxu0 0.0
        %576 = vmatpush2.msra.mxu0 0.0
        %577 = vmatprep.subr.mxu0 0.0
        %578 = vmatpush2.msra.mxu0 0.0
        %579 = vmatprep.subr.mxu0 0.0
        %580 = vmatpush2.msra.mxu0 0.0
        %581 = vmatprep.subr.mxu0 0.0
        %582 = vmatpush2.msra.mxu0 0.0
        %583 = vmatprep.subr.mxu0 0.0
        %584 = vmatpush2.msra.mxu0 0.0
        %585 = vmatprep.subr.mxu0 0.0
        %586 = vmatpush2.msra.mxu0 0.0
        %587 = vmatprep.subr.mxu0 0.0
        %588 = vmatpush2.msra.mxu0 0.0
        %589 = vmatprep.subr.mxu0 0.0
        %590 = vmatpush2.msra.mxu0 0.0
        %591 = vmatprep.mubr.f32.mxu0 0.0
        %592 = vmatmul.mubr.f32.gmra.mxu0 %v519
        %v593 = vpop.f32.mrf.mxu0
        %v594 = vadd.f32 %v525, %v593
        %v595 = vpop.f32.mrf.mxu0
        %596 = vdwg.mxu0
        %v597 = vtanh.pop %v594
        %v598 = vrot.slane %v400, 2
        %v599 = vrot.slane %v405, 1
        %v600 = vsel %vm440, %v599, %v598
        %v601 = vsel %vm443, %v410, %v600
        %v602 = vrot.slane %v415, 7
        %v603 = vsel %vm446, %v602, %v601
        %605 = vmatprep.subr.mxu0 0.0
        %606 = vmatpush1.msra.mxu0 %v433
        %607 = vmatprep.subr.mxu0 0.0
        %608 = vmatpush1.msra.mxu0 %v432
        %609 = vmatprep.subr.mxu0 0.0
        %610 = vmatpush1.msra.mxu0 %v431
        %611 = vmatprep.subr.mxu0 0.0
        %612 = vmatpush1.msra.mxu0 %v430
        %613 = vmatprep.subr.mxu0 0.0
        %614 = vmatpush1.msra.mxu0 %v429
        %615 = vmatprep.subr.mxu0 0.0
        %616 = vmatpush1.msra.mxu0 %v428
        %617 = vmatprep.subr.mxu0 0.0
        %618 = vmatpush1.msra.mxu0 %v427
        %619 = vmatprep.subr.mxu0 0.0
        %620 = vmatpush1.msra.mxu0 %v426
        %621 = vmatprep.subr.mxu0 0.0
        %622 = vmatpush1.msra.mxu0 %v425
        %623 = vmatprep.subr.mxu0 0.0
        %624 = vmatpush1.msra.mxu0 %v424
        %625 = vmatprep.subr.mxu0 0.0
        %626 = vmatpush1.msra.mxu0 %v423
        %627 = vmatprep.subr.mxu0 0.0
        %628 = vmatpush1.msra.mxu0 %v422
        %629 = vmatprep.subr.mxu0 0.0
        %630 = vmatpush1.msra.mxu0 %v421
        %631 = vmatprep.subr.mxu0 0.0
        %632 = vmatpush1.msra.mxu0 %v420
        %633 = vmatprep.subr.mxu0 0.0
        %634 = vmatpush1.msra.mxu0 %v419
        %635 = vmatprep.subr.mxu0 0.0
        %636 = vmatpush1.msra.mxu0 %v418
        %637 = vmatprep.subr.mxu0 0.0
        %638 = vmatpush2.msra.mxu0 0.0
        %639 = vmatprep.subr.mxu0 0.0
        %640 = vmatpush2.msra.mxu0 0.0
        %641 = vmatprep.subr.mxu0 0.0
        %642 = vmatpush2.msra.mxu0 0.0
        %643 = vmatprep.subr.mxu0 0.0
        %644 = vmatpush2.msra.mxu0 0.0
        %645 = vmatprep.subr.mxu0 0.0
        %646 = vmatpush2.msra.mxu0 0.0
        %647 = vmatprep.subr.mxu0 0.0
        %648 = vmatpush2.msra.mxu0 0.0
        %649 = vmatprep.subr.mxu0 0.0
        %650 = vmatpush2.msra.mxu0 0.0
        %651 = vmatprep.subr.mxu0 0.0
        %652 = vmatpush2.msra.mxu0 0.0
        %653 = vmatprep.subr.mxu0 0.0
        %654 = vmatpush2.msra.mxu0 0.0
        %655 = vmatprep.subr.mxu0 0.0
        %656 = vmatpush2.msra.mxu0 0.0
        %657 = vmatprep.subr.mxu0 0.0
        %658 = vmatpush2.msra.mxu0 0.0
        %659 = vmatprep.subr.mxu0 0.0
        %660 = vmatpush2.msra.mxu0 0.0
        %661 = vmatprep.subr.mxu0 0.0
        %662 = vmatpush2.msra.mxu0 0.0
        %663 = vmatprep.subr.mxu0 0.0
        %664 = vmatpush2.msra.mxu0 0.0
        %665 = vmatprep.subr.mxu0 0.0
        %666 = vmatpush2.msra.mxu0 0.0
        %667 = vmatprep.subr.mxu0 0.0
        %668 = vmatpush2.msra.mxu0 0.0
        %669 = vmatprep.mubr.f32.mxu0 0.0
        %670 = vmatmul.mubr.f32.gmra.mxu0 %v597
        %v671 = vpop.f32.mrf.mxu0
        %v672 = vadd.f32 %v603, %v671
        %v673 = vpop.f32.mrf.mxu0
        %674 = vdwg.mxu0
        %v675 = vtanh.pop %v672
        %v676 = vrot.slane %v400, 3
        %v677 = vrot.slane %v405, 2
        %v678 = vsel %vm440, %v677, %v676
        %v679 = vrot.slane %v410, 1
        %v680 = vsel %vm443, %v679, %v678
        %v681 = vsel %vm446, %v415, %v680
        %683 = vmatprep.subr.mxu0 0.0
        %684 = vmatpush1.msra.mxu0 %v433
        %685 = vmatprep.subr.mxu0 0.0
        %686 = vmatpush1.msra.mxu0 %v432
        %687 = vmatprep.subr.mxu0 0.0
        %688 = vmatpush1.msra.mxu0 %v431
        %689 = vmatprep.subr.mxu0 0.0
        %690 = vmatpush1.msra.mxu0 %v430
        %691 = vmatprep.subr.mxu0 0.0
        %692 = vmatpush1.msra.mxu0 %v429
        %693 = vmatprep.subr.mxu0 0.0
        %694 = vmatpush1.msra.mxu0 %v428
        %695 = vmatprep.subr.mxu0 0.0
        %696 = vmatpush1.msra.mxu0 %v427
        %697 = vmatprep.subr.mxu0 0.0
        %698 = vmatpush1.msra.mxu0 %v426
        %699 = vmatprep.subr.mxu0 0.0
        %700 = vmatpush1.msra.mxu0 %v425
        %701 = vmatprep.subr.mxu0 0.0
        %702 = vmatpush1.msra.mxu0 %v424
        %703 = vmatprep.subr.mxu0 0.0
        %704 = vmatpush1.msra.mxu0 %v423
        %705 = vmatprep.subr.mxu0 0.0
        %706 = vmatpush1.msra.mxu0 %v422
        %707 = vmatprep.subr.mxu0 0.0
        %708 = vmatpush1.msra.mxu0 %v421
        %709 = vmatprep.subr.mxu0 0.0
        %710 = vmatpush1.msra.mxu0 %v420
        %711 = vmatprep.subr.mxu0 0.0
        %712 = vmatpush1.msra.mxu0 %v419
        %713 = vmatprep.subr.mxu0 0.0
        %714 = vmatpush1.msra.mxu0 %v418
        %715 = vmatprep.subr.mxu0 0.0
        %716 = vmatpush2.msra.mxu0 0.0
        %717 = vmatprep.subr.mxu0 0.0
        %718 = vmatpush2.msra.mxu0 0.0
        %719 = vmatprep.subr.mxu0 0.0
        %720 = vmatpush2.msra.mxu0 0.0
        %721 = vmatprep.subr.mxu0 0.0
        %722 = vmatpush2.msra.mxu0 0.0
        %723 = vmatprep.subr.mxu0 0.0
        %724 = vmatpush2.msra.mxu0 0.0
        %725 = vmatprep.subr.mxu0 0.0
        %726 = vmatpush2.msra.mxu0 0.0
        %727 = vmatprep.subr.mxu0 0.0
        %728 = vmatpush2.msra.mxu0 0.0
        %729 = vmatprep.subr.mxu0 0.0
        %730 = vmatpush2.msra.mxu0 0.0
        %731 = vmatprep.subr.mxu0 0.0
        %732 = vmatpush2.msra.mxu0 0.0
        %733 = vmatprep.subr.mxu0 0.0
        %734 = vmatpush2.msra.mxu0 0.0
        %735 = vmatprep.subr.mxu0 0.0
        %736 = vmatpush2.msra.mxu0 0.0
        %737 = vmatprep.subr.mxu0 0.0
        %738 = vmatpush2.msra.mxu0 0.0
        %739 = vmatprep.subr.mxu0 0.0
        %740 = vmatpush2.msra.mxu0 0.0
        %741 = vmatprep.subr.mxu0 0.0
        %742 = vmatpush2.msra.mxu0 0.0
        %743 = vmatprep.subr.mxu0 0.0
        %744 = vmatpush2.msra.mxu0 0.0
        %745 = vmatprep.subr.mxu0 0.0
        %746 = vmatpush2.msra.mxu0 0.0
        %747 = vmatprep.mubr.f32.mxu0 0.0
        %748 = vmatmul.mubr.f32.gmra.mxu0 %v675
        %v749 = vpop.f32.mrf.mxu0
        %v750 = vadd.f32 %v681, %v749
        %v751 = vpop.f32.mrf.mxu0
        %752 = vdwg.mxu0
        %v753 = vtanh.pop %v750
        %v754 = vrot.slane %v400, 4
        %v755 = vrot.slane %v405, 3
        %v756 = vsel %vm440, %v755, %v754
        %v757 = vrot.slane %v410, 2
        %v758 = vsel %vm443, %v757, %v756
        %v759 = vrot.slane %v415, 1
        %v760 = vsel %vm446, %v759, %v758
        %762 = vmatprep.subr.mxu0 0.0
        %763 = vmatpush1.msra.mxu0 %v433
        %764 = vmatprep.subr.mxu0 0.0
        %765 = vmatpush1.msra.mxu0 %v432
        %766 = vmatprep.subr.mxu0 0.0
        %767 = vmatpush1.msra.mxu0 %v431
        %768 = vmatprep.subr.mxu0 0.0
        %769 = vmatpush1.msra.mxu0 %v430
        %770 = vmatprep.subr.mxu0 0.0
        %771 = vmatpush1.msra.mxu0 %v429
        %772 = vmatprep.subr.mxu0 0.0
        %773 = vmatpush1.msra.mxu0 %v428
        %774 = vmatprep.subr.mxu0 0.0
        %775 = vmatpush1.msra.mxu0 %v427
        %776 = vmatprep.subr.mxu0 0.0
        %777 = vmatpush1.msra.mxu0 %v426
        %778 = vmatprep.subr.mxu0 0.0
        %779 = vmatpush1.msra.mxu0 %v425
        %780 = vmatprep.subr.mxu0 0.0
        %781 = vmatpush1.msra.mxu0 %v424
        %782 = vmatprep.subr.mxu0 0.0
        %783 = vmatpush1.msra.mxu0 %v423
        %784 = vmatprep.subr.mxu0 0.0
        %785 = vmatpush1.msra.mxu0 %v422
        %786 = vmatprep.subr.mxu0 0.0
        %787 = vmatpush1.msra.mxu0 %v421
        %788 = vmatprep.subr.mxu0 0.0
        %789 = vmatpush1.msra.mxu0 %v420
        %790 = vmatprep.subr.mxu0 0.0
        %791 = vmatpush1.msra.mxu0 %v419
        %792 = vmatprep.subr.mxu0 0.0
        %793 = vmatpush1.msra.mxu0 %v418
        %794 = vmatprep.subr.mxu0 0.0
        %795 = vmatpush2.msra.mxu0 0.0
        %796 = vmatprep.subr.mxu0 0.0
        %797 = vmatpush2.msra.mxu0 0.0
        %798 = vmatprep.subr.mxu0 0.0
        %799 = vmatpush2.msra.mxu0 0.0
        %800 = vmatprep.subr.mxu0 0.0
        %801 = vmatpush2.msra.mxu0 0.0
        %802 = vmatprep.subr.mxu0 0.0
        %803 = vmatpush2.msra.mxu0 0.0
        %804 = vmatprep.subr.mxu0 0.0
        %805 = vmatpush2.msra.mxu0 0.0
        %806 = vmatprep.subr.mxu0 0.0
        %807 = vmatpush2.msra.mxu0 0.0
        %808 = vmatprep.subr.mxu0 0.0
        %809 = vmatpush2.msra.mxu0 0.0
        %810 = vmatprep.subr.mxu0 0.0
        %811 = vmatpush2.msra.mxu0 0.0
        %812 = vmatprep.subr.mxu0 0.0
        %813 = vmatpush2.msra.mxu0 0.0
        %814 = vmatprep.subr.mxu0 0.0
        %815 = vmatpush2.msra.mxu0 0.0
        %816 = vmatprep.subr.mxu0 0.0
        %817 = vmatpush2.msra.mxu0 0.0
        %818 = vmatprep.subr.mxu0 0.0
        %819 = vmatpush2.msra.mxu0 0.0
        %820 = vmatprep.subr.mxu0 0.0
        %821 = vmatpush2.msra.mxu0 0.0
        %822 = vmatprep.subr.mxu0 0.0
        %823 = vmatpush2.msra.mxu0 0.0
        %824 = vmatprep.subr.mxu0 0.0
        %825 = vmatpush2.msra.mxu0 0.0
        %826 = vmatprep.mubr.f32.mxu0 0.0
        %827 = vmatmul.mubr.f32.gmra.mxu0 %v753
        %v828 = vpop.f32.mrf.mxu0
        %v829 = vadd.f32 %v760, %v828
        %v830 = vpop.f32.mrf.mxu0
        %831 = vdwg.mxu0
        %v832 = vtanh.pop %v829
        %v833 = vrot.slane %v400, 5
        %v834 = vrot.slane %v405, 4
        %v835 = vsel %vm440, %v834, %v833
        %v836 = vrot.slane %v410, 3
        %v837 = vsel %vm443, %v836, %v835
        %v838 = vrot.slane %v415, 2
        %v839 = vsel %vm446, %v838, %v837
        %841 = vmatprep.subr.mxu0 0.0
        %842 = vmatpush1.msra.mxu0 %v433
        %843 = vmatprep.subr.mxu0 0.0
        %844 = vmatpush1.msra.mxu0 %v432
        %845 = vmatprep.subr.mxu0 0.0
        %846 = vmatpush1.msra.mxu0 %v431
        %847 = vmatprep.subr.mxu0 0.0
        %848 = vmatpush1.msra.mxu0 %v430
        %849 = vmatprep.subr.mxu0 0.0
        %850 = vmatpush1.msra.mxu0 %v429
        %851 = vmatprep.subr.mxu0 0.0
        %852 = vmatpush1.msra.mxu0 %v428
        %853 = vmatprep.subr.mxu0 0.0
        %854 = vmatpush1.msra.mxu0 %v427
        %855 = vmatprep.subr.mxu0 0.0
        %856 = vmatpush1.msra.mxu0 %v426
        %857 = vmatprep.subr.mxu0 0.0
        %858 = vmatpush1.msra.mxu0 %v425
        %859 = vmatprep.subr.mxu0 0.0
        %860 = vmatpush1.msra.mxu0 %v424
        %861 = vmatprep.subr.mxu0 0.0
        %862 = vmatpush1.msra.mxu0 %v423
        %863 = vmatprep.subr.mxu0 0.0
        %864 = vmatpush1.msra.mxu0 %v422
        %865 = vmatprep.subr.mxu0 0.0
        %866 = vmatpush1.msra.mxu0 %v421
        %867 = vmatprep.subr.mxu0 0.0
        %868 = vmatpush1.msra.mxu0 %v420
        %869 = vmatprep.subr.mxu0 0.0
        %870 = vmatpush1.msra.mxu0 %v419
        %871 = vmatprep.subr.mxu0 0.0
        %872 = vmatpush1.msra.mxu0 %v418
        %873 = vmatprep.subr.mxu0 0.0
        %874 = vmatpush2.msra.mxu0 0.0
        %875 = vmatprep.subr.mxu0 0.0
        %876 = vmatpush2.msra.mxu0 0.0
        %877 = vmatprep.subr.mxu0 0.0
        %878 = vmatpush2.msra.mxu0 0.0
        %879 = vmatprep.subr.mxu0 0.0
        %880 = vmatpush2.msra.mxu0 0.0
        %881 = vmatprep.subr.mxu0 0.0
        %882 = vmatpush2.msra.mxu0 0.0
        %883 = vmatprep.subr.mxu0 0.0
        %884 = vmatpush2.msra.mxu0 0.0
        %885 = vmatprep.subr.mxu0 0.0
        %886 = vmatpush2.msra.mxu0 0.0
        %887 = vmatprep.subr.mxu0 0.0
        %888 = vmatpush2.msra.mxu0 0.0
        %889 = vmatprep.subr.mxu0 0.0
        %890 = vmatpush2.msra.mxu0 0.0
        %891 = vmatprep.subr.mxu0 0.0
        %892 = vmatpush2.msra.mxu0 0.0
        %893 = vmatprep.subr.mxu0 0.0
        %894 = vmatpush2.msra.mxu0 0.0
        %895 = vmatprep.subr.mxu0 0.0
        %896 = vmatpush2.msra.mxu0 0.0
        %897 = vmatprep.subr.mxu0 0.0
        %898 = vmatpush2.msra.mxu0 0.0
        %899 = vmatprep.subr.mxu0 0.0
        %900 = vmatpush2.msra.mxu0 0.0
        %901 = vmatprep.subr.mxu0 0.0
        %902 = vmatpush2.msra.mxu0 0.0
        %903 = vmatprep.subr.mxu0 0.0
        %904 = vmatpush2.msra.mxu0 0.0
        %905 = vmatprep.mubr.f32.mxu0 0.0
        %906 = vmatmul.mubr.f32.gmra.mxu0 %v832
        %v907 = vpop.f32.mrf.mxu0
        %v908 = vadd.f32 %v839, %v907
        %v909 = vpop.f32.mrf.mxu0
        %910 = vdwg.mxu0
        %v911 = vtanh.pop %v908
        %v912 = vrot.slane %v400, 6
        %v913 = vrot.slane %v405, 5
        %v914 = vsel %vm440, %v913, %v912
        %v915 = vrot.slane %v410, 4
        %v916 = vsel %vm443, %v915, %v914
        %v917 = vrot.slane %v415, 3
        %v918 = vsel %vm446, %v917, %v916
        %920 = vmatprep.subr.mxu0 0.0
        %921 = vmatpush1.msra.mxu0 %v433
        %922 = vmatprep.subr.mxu0 0.0
        %923 = vmatpush1.msra.mxu0 %v432
        %924 = vmatprep.subr.mxu0 0.0
        %925 = vmatpush1.msra.mxu0 %v431
        %926 = vmatprep.subr.mxu0 0.0
        %927 = vmatpush1.msra.mxu0 %v430
        %928 = vmatprep.subr.mxu0 0.0
        %929 = vmatpush1.msra.mxu0 %v429
        %930 = vmatprep.subr.mxu0 0.0
        %931 = vmatpush1.msra.mxu0 %v428
        %932 = vmatprep.subr.mxu0 0.0
        %933 = vmatpush1.msra.mxu0 %v427
        %934 = vmatprep.subr.mxu0 0.0
        %935 = vmatpush1.msra.mxu0 %v426
        %936 = vmatprep.subr.mxu0 0.0
        %937 = vmatpush1.msra.mxu0 %v425
        %938 = vmatprep.subr.mxu0 0.0
        %939 = vmatpush1.msra.mxu0 %v424
        %940 = vmatprep.subr.mxu0 0.0
        %941 = vmatpush1.msra.mxu0 %v423
        %942 = vmatprep.subr.mxu0 0.0
        %943 = vmatpush1.msra.mxu0 %v422
        %944 = vmatprep.subr.mxu0 0.0
        %945 = vmatpush1.msra.mxu0 %v421
        %946 = vmatprep.subr.mxu0 0.0
        %947 = vmatpush1.msra.mxu0 %v420
        %948 = vmatprep.subr.mxu0 0.0
        %949 = vmatpush1.msra.mxu0 %v419
        %950 = vmatprep.subr.mxu0 0.0
        %951 = vmatpush1.msra.mxu0 %v418
        %952 = vmatprep.subr.mxu0 0.0
        %953 = vmatpush2.msra.mxu0 0.0
        %954 = vmatprep.subr.mxu0 0.0
        %955 = vmatpush2.msra.mxu0 0.0
        %956 = vmatprep.subr.mxu0 0.0
        %957 = vmatpush2.msra.mxu0 0.0
        %958 = vmatprep.subr.mxu0 0.0
        %959 = vmatpush2.msra.mxu0 0.0
        %960 = vmatprep.subr.mxu0 0.0
        %961 = vmatpush2.msra.mxu0 0.0
        %962 = vmatprep.subr.mxu0 0.0
        %963 = vmatpush2.msra.mxu0 0.0
        %964 = vmatprep.subr.mxu0 0.0
        %965 = vmatpush2.msra.mxu0 0.0
        %966 = vmatprep.subr.mxu0 0.0
        %967 = vmatpush2.msra.mxu0 0.0
        %968 = vmatprep.subr.mxu0 0.0
        %969 = vmatpush2.msra.mxu0 0.0
        %970 = vmatprep.subr.mxu0 0.0
        %971 = vmatpush2.msra.mxu0 0.0
        %972 = vmatprep.subr.mxu0 0.0
        %973 = vmatpush2.msra.mxu0 0.0
        %974 = vmatprep.subr.mxu0 0.0
        %975 = vmatpush2.msra.mxu0 0.0
        %976 = vmatprep.subr.mxu0 0.0
        %977 = vmatpush2.msra.mxu0 0.0
        %978 = vmatprep.subr.mxu0 0.0
        %979 = vmatpush2.msra.mxu0 0.0
        %980 = vmatprep.subr.mxu0 0.0
        %981 = vmatpush2.msra.mxu0 0.0
        %982 = vmatprep.subr.mxu0 0.0
        %983 = vmatpush2.msra.mxu0 0.0
        %984 = vmatprep.mubr.f32.mxu0 0.0
        %985 = vmatmul.mubr.f32.gmra.mxu0 %v911
        %v986 = vpop.f32.mrf.mxu0
        %v987 = vadd.f32 %v918, %v986
        %v988 = vpop.f32.mrf.mxu0
        %989 = vdwg.mxu0
        %v990 = vtanh.pop %v987
        %v991 = vrot.slane %v400, 7
        %v992 = vrot.slane %v405, 6
        %v993 = vsel %vm440, %v992, %v991
        %v994 = vrot.slane %v410, 5
        %v995 = vsel %vm443, %v994, %v993
        %v996 = vrot.slane %v415, 4
        %v997 = vsel %vm446, %v996, %v995
        %999 = vmatprep.subr.mxu0 0.0
        %1000 = vmatpush1.msra.mxu0 %v433
        %1001 = vmatprep.subr.mxu0 0.0
        %1002 = vmatpush1.msra.mxu0 %v432
        %1003 = vmatprep.subr.mxu0 0.0
        %1004 = vmatpush1.msra.mxu0 %v431
        %1005 = vmatprep.subr.mxu0 0.0
        %1006 = vmatpush1.msra.mxu0 %v430
        %1007 = vmatprep.subr.mxu0 0.0
        %1008 = vmatpush1.msra.mxu0 %v429
        %1009 = vmatprep.subr.mxu0 0.0
        %1010 = vmatpush1.msra.mxu0 %v428
        %1011 = vmatprep.subr.mxu0 0.0
        %1012 = vmatpush1.msra.mxu0 %v427
        %1013 = vmatprep.subr.mxu0 0.0
        %1014 = vmatpush1.msra.mxu0 %v426
        %1015 = vmatprep.subr.mxu0 0.0
        %1016 = vmatpush1.msra.mxu0 %v425
        %1017 = vmatprep.subr.mxu0 0.0
        %1018 = vmatpush1.msra.mxu0 %v424
        %1019 = vmatprep.subr.mxu0 0.0
        %1020 = vmatpush1.msra.mxu0 %v423
        %1021 = vmatprep.subr.mxu0 0.0
        %1022 = vmatpush1.msra.mxu0 %v422
        %1023 = vmatprep.subr.mxu0 0.0
        %1024 = vmatpush1.msra.mxu0 %v421
        %1025 = vmatprep.subr.mxu0 0.0
        %1026 = vmatpush1.msra.mxu0 %v420
        %1027 = vmatprep.subr.mxu0 0.0
        %1028 = vmatpush1.msra.mxu0 %v419
        %1029 = vmatprep.subr.mxu0 0.0
        %1030 = vmatpush1.msra.mxu0 %v418
        %1031 = vmatprep.subr.mxu0 0.0
        %1032 = vmatpush2.msra.mxu0 0.0
        %1033 = vmatprep.subr.mxu0 0.0
        %1034 = vmatpush2.msra.mxu0 0.0
        %1035 = vmatprep.subr.mxu0 0.0
        %1036 = vmatpush2.msra.mxu0 0.0
        %1037 = vmatprep.subr.mxu0 0.0
        %1038 = vmatpush2.msra.mxu0 0.0
        %1039 = vmatprep.subr.mxu0 0.0
        %1040 = vmatpush2.msra.mxu0 0.0
        %1041 = vmatprep.subr.mxu0 0.0
        %1042 = vmatpush2.msra.mxu0 0.0
        %1043 = vmatprep.subr.mxu0 0.0
        %1044 = vmatpush2.msra.mxu0 0.0
        %1045 = vmatprep.subr.mxu0 0.0
        %1046 = vmatpush2.msra.mxu0 0.0
        %1047 = vmatprep.subr.mxu0 0.0
        %1048 = vmatpush2.msra.mxu0 0.0
        %1049 = vmatprep.subr.mxu0 0.0
        %1050 = vmatpush2.msra.mxu0 0.0
        %1051 = vmatprep.subr.mxu0 0.0
        %1052 = vmatpush2.msra.mxu0 0.0
        %1053 = vmatprep.subr.mxu0 0.0
        %1054 = vmatpush2.msra.mxu0 0.0
        %1055 = vmatprep.subr.mxu0 0.0
        %1056 = vmatpush2.msra.mxu0 0.0
        %1057 = vmatprep.subr.mxu0 0.0
        %1058 = vmatpush2.msra.mxu0 0.0
        %1059 = vmatprep.subr.mxu0 0.0
        %1060 = vmatpush2.msra.mxu0 0.0
        %1061 = vmatprep.subr.mxu0 0.0
        %1062 = vmatpush2.msra.mxu0 0.0
        %1063 = vmatprep.mubr.f32.mxu0 0.0
        %1064 = vmatmul.mubr.f32.gmra.mxu0 %v990
        %v1065 = vpop.f32.mrf.mxu0
        %v1066 = vadd.f32 %v997, %v1065
        %v1067 = vpop.f32.mrf.mxu0
        %1068 = vdwg.mxu0
        %v1069 = vtanh.pop %v1066
        %1070 = vst [vmem:[#allocation2] sm:$0xf] %v1069
        %p1071 = scmp.eq.s32.totalorder %s23, 1
        // Predicated region
        $region65: #{tpu_custom_call.1} parent=43 // pred_check
          %p1072 = pneg %p1071
        $region66: #{tpu_custom_call.1} parent=43 // pred_check_branch
          %1074 = sbr.rel (%p1072) target = $region68
        $region67: #{tpu_custom_call.1} parent=43 // pred_region
          %v1075 = vld [vmem:[#allocation9] sm:$0xff]
          %v1076 = vld [vmem:[#allocation9 + $0x8] sm:$0xff]
          %v1077 = vld [vmem:[#allocation9 + $0x10] sm:$0xff]
          %v1078 = vld [vmem:[#allocation9 + $0x18] sm:$0xff]
          %v1079 = vld [vmem:[#allocation9 + $0x20] sm:$0xff]
          %v1080 = vld [vmem:[#allocation9 + $0x28] sm:$0xff]
          %v1081 = vld [vmem:[#allocation9 + $0x30] sm:$0xff]
          %v1082 = vld [vmem:[#allocation9 + $0x38] sm:$0xff]
          %v1083 = vld [vmem:[#allocation9 + $0x40] sm:$0xff]
          %v1084 = vld [vmem:[#allocation9 + $0x48] sm:$0xff]
          %v1085 = vld [vmem:[#allocation9 + $0x50] sm:$0xff]
          %v1086 = vld [vmem:[#allocation9 + $0x58] sm:$0xff]
          %v1087 = vld [vmem:[#allocation9 + $0x60] sm:$0xff]
          %v1088 = vld [vmem:[#allocation9 + $0x68] sm:$0xff]
          %v1089 = vld [vmem:[#allocation9 + $0x70] sm:$0xff]
          %v1090 = vld [vmem:[#allocation9 + $0x78] sm:$0xff]
          %v1091 = vld [vmem:[%s5] sm:$0x1]
          %v1093 = vlaneseq
          %v1094 = vshrl.u32 %v1093, 7
          %v1095 = vsub.s32 0, %v1094
          %v1096 = vrot.slane %v1091, %v1095
          %1098 = vmatprep.subr.mxu0 0.0
          %1099 = vmatpush1.msra.mxu0 %v1090
          %1100 = vmatprep.subr.mxu0 0.0
          %1101 = vmatpush1.msra.mxu0 %v1089
          %1102 = vmatprep.subr.mxu0 0.0
          %1103 = vmatpush1.msra.mxu0 %v1088
          %1104 = vmatprep.subr.mxu0 0.0
          %1105 = vmatpush1.msra.mxu0 %v1087
          %1106 = vmatprep.subr.mxu0 0.0
          %1107 = vmatpush1.msra.mxu0 %v1086
          %1108 = vmatprep.subr.mxu0 0.0
          %1109 = vmatpush1.msra.mxu0 %v1085
          %1110 = vmatprep.subr.mxu0 0.0
          %1111 = vmatpush1.msra.mxu0 %v1084
          %1112 = vmatprep.subr.mxu0 0.0
          %1113 = vmatpush1.msra.mxu0 %v1083
          %1114 = vmatprep.subr.mxu0 0.0
          %1115 = vmatpush1.msra.mxu0 %v1082
          %1116 = vmatprep.subr.mxu0 0.0
          %1117 = vmatpush1.msra.mxu0 %v1081
          %1118 = vmatprep.subr.mxu0 0.0
          %1119 = vmatpush1.msra.mxu0 %v1080
          %1120 = vmatprep.subr.mxu0 0.0
          %1121 = vmatpush1.msra.mxu0 %v1079
          %1122 = vmatprep.subr.mxu0 0.0
          %1123 = vmatpush1.msra.mxu0 %v1078
          %1124 = vmatprep.subr.mxu0 0.0
          %1125 = vmatpush1.msra.mxu0 %v1077
          %1126 = vmatprep.subr.mxu0 0.0
          %1127 = vmatpush1.msra.mxu0 %v1076
          %1128 = vmatprep.subr.mxu0 0.0
          %1129 = vmatpush1.msra.mxu0 %v1075
          %1130 = vmatprep.subr.mxu0 0.0
          %1131 = vmatpush2.msra.mxu0 0.0
          %1132 = vmatprep.subr.mxu0 0.0
          %1133 = vmatpush2.msra.mxu0 0.0
          %1134 = vmatprep.subr.mxu0 0.0
          %1135 = vmatpush2.msra.mxu0 0.0
          %1136 = vmatprep.subr.mxu0 0.0
          %1137 = vmatpush2.msra.mxu0 0.0
          %1138 = vmatprep.subr.mxu0 0.0
          %1139 = vmatpush2.msra.mxu0 0.0
          %1140 = vmatprep.subr.mxu0 0.0
          %1141 = vmatpush2.msra.mxu0 0.0
          %1142 = vmatprep.subr.mxu0 0.0
          %1143 = vmatpush2.msra.mxu0 0.0
          %1144 = vmatprep.subr.mxu0 0.0
          %1145 = vmatpush2.msra.mxu0 0.0
          %1146 = vmatprep.subr.mxu0 0.0
          %1147 = vmatpush2.msra.mxu0 0.0
          %1148 = vmatprep.subr.mxu0 0.0
          %1149 = vmatpush2.msra.mxu0 0.0
          %1150 = vmatprep.subr.mxu0 0.0
          %1151 = vmatpush2.msra.mxu0 0.0
          %1152 = vmatprep.subr.mxu0 0.0
          %1153 = vmatpush2.msra.mxu0 0.0
          %1154 = vmatprep.subr.mxu0 0.0
          %1155 = vmatpush2.msra.mxu0 0.0
          %1156 = vmatprep.subr.mxu0 0.0
          %1157 = vmatpush2.msra.mxu0 0.0
          %1158 = vmatprep.subr.mxu0 0.0
          %1159 = vmatpush2.msra.mxu0 0.0
          %1160 = vmatprep.subr.mxu0 0.0
          %1161 = vmatpush2.msra.mxu0 0.0
          %1162 = vmatprep.mubr.f32.mxu0 0.0
          %1163 = vmatmul.mubr.f32.gmra.mxu0 %v1069
          %v1164 = vpop.f32.mrf.mxu0
          %v1165 = vadd.f32 %v1096, %v1164
          %v1166 = vpop.f32.mrf.mxu0
          %1167 = vdwg.mxu0
          %1168 = vst [vmem:[#allocation11] sm:$0xf] %v1165
        $region68: #{tpu_custom_call.1} parent=43 // pred_fallthru
          _
        // Predicated region
        $region69: #{tpu_custom_call.1} parent=43 // pred_check
          %p1169 = pneg %p167
        $region70: #{tpu_custom_call.1} parent=43 // pred_check_branch
          %1171 = sbr.rel (%p1169) target = $region72
        $region71: #{tpu_custom_call.1} parent=43 // pred_region
          %s1173 = ssub.s32 64, 64
          %1174 = vsyncadd [#allocation5], %s1173
          %s1176 = sshll.u32 [#allocation11], 4
          %s1177 = int_to_ptr.vmem [resolvable:$true] %s1176
          %1179 = dma.vmem_to_hbm [thread:$0]  %s1177, 64, %s6, [#allocation5]
        $region72: #{tpu_custom_call.1} parent=43 // pred_fallthru
          _
        // Predicated region
        $region73: #{tpu_custom_call.1} parent=43 // pred_check
          %p1180 = pneg %p167
        $region74: #{tpu_custom_call.1} parent=43 // pred_check_branch
          %1182 = sbr.rel (%p1180) target = $region76
        $region75: #{tpu_custom_call.1} parent=43 // pred_region
          %1183 = dma.done [#allocation5], 64
        $region76: #{tpu_custom_call.1} parent=43 // pred_fallthru
          _
      $region44: #{tpu_custom_call.1} parent=5 // pred_fallthru
        _
      %p1184 = scmp.le.s32.totalorder 2, %s18
      // Predicated region
      $region77: #{tpu_custom_call.1} parent=5 // pred_check
        %p1185 = pneg %p1184
      $region78: #{tpu_custom_call.1} parent=5 // pred_check_branch
        %1187 = sbr.rel (%p1185) target = $region80
      $region79: #{tpu_custom_call.1} parent=5 // pred_region
        %s1188 = ssub.s32 %s18, 2
      $region80: #{tpu_custom_call.1} parent=5 // pred_fallthru
        _
    $region6: #{tpu_custom_call.1} parent=1 // loop_footer
      %s22 = sadd.s32 1, %s18
    $region7: #{tpu_custom_call.1} parent=1 // loop_footer_branch
      %17 = sbr.rel target = $region3
    $region8: #{tpu_custom_call.1} parent=1 // loop_exit
      _
    %1189 = vsyncpa [#allocation4], 1
    %s1190 = scalar_lea.sflag [#allocation4], 1
    %1191 = vsyncpa %s1190, 1
    %1192 = vsyncpa [#allocation7], 1
    %1193 = vsyncpa [#allocation10], 1
    %1194 = vsyncpa [#allocation5], 1
    %s1195 = scalar_lea.sflag [#allocation5], 1
    %1196 = vsyncpa %s1195, 1

</llo_original>
